<compile_context>
chip_gen: v7x
topology: tpu7x:2x2x1
jax: 0.10.0
libtpu: 0.0.40
codegen_flags: <defaults>
</compile_context>

<pallas_src>
import functools

import jax
import jax.numpy as jnp
from jax import lax
from jax.experimental import pallas as pl
from jax.experimental.pallas import tpu as pltpu

LANE = 128
BF16_SUBLANE = 16  # bf16 packs 16 rows per vreg; round batch tiles to 16.


def _round_up(x, m):
    return ((x + m - 1) // m) * m


def _critic_kernel(x_ref, w1_ref, b1_ref, w2_ref, b2_ref, w3_ref, b3_ref,
                   o_ref, *, transposed_out):
    # x: (tm, state_dim) f32 streamed from HBM; cast to bf16 in-kernel.
    x = x_ref[...].astype(jnp.bfloat16)
    h1 = jnp.tanh(
        jnp.dot(x, w1_ref[...], preferred_element_type=jnp.float32) + b1_ref[...]
    ).astype(jnp.bfloat16)
    h2 = jnp.tanh(
        jnp.dot(h1, w2_ref[...], preferred_element_type=jnp.float32) + b2_ref[...]
    ).astype(jnp.bfloat16)
    if transposed_out:
        # (out_dim, tm) = w3r(out_dim, hidden) . h2(tm, hidden)^T   (NT matmul,
        # same dimension_numbers pattern as q @ k.T in flash attention).
        out = lax.dot_general(
            w3_ref[...], h2, (((1,), (1,)), ((), ())),
            preferred_element_type=jnp.float32) + b3_ref[...]
    else:
        # (tm, out_dim) direct output (out_dim equals the full array dim).
        out = jnp.dot(h2, w3_ref[...],
                      preferred_element_type=jnp.float32) + b3_ref[...]
    o_ref[...] = out.astype(o_ref.dtype)


def critic_forward(state, params, *, tm=4096):
    """state: [B, state_dim] float32.  params: dict of (W_t, b) per layer,
    W_t in [in, out] layout, b in [1, out]."""
    (w1, b1), (w2, b2), (w3, b3) = params["l1"], params["l2"], params["l3"]
    B, state_dim = state.shape
    hidden = w1.shape[1]
    out_dim = w3.shape[1]

    # Tiny resident weights as bf16 (MXU operands); biases stay f32.
    w1b = w1.astype(jnp.bfloat16)
    w2b = w2.astype(jnp.bfloat16)
    b1f = b1.astype(jnp.float32)
    b2f = b2.astype(jnp.float32)

    # Batch tile: one grid step for small batches; 128-aligned when multi-tile
    # (keeps the transposed output's last dim lane-dense).  No activation pad:
    # the last tile's OOB rows are garbage-in / dropped-on-write.
    tm = min(tm, _round_up(B, BF16_SUBLANE))
    tm = _round_up(max(tm, BF16_SUBLANE), BF16_SUBLANE)
    if tm < B:
        tm = _round_up(tm, LANE)
    n_tiles = -(-B // tm)
    grid = (n_tiles,)

    common_in_specs = [
        pl.BlockSpec((tm, state_dim), lambda i: (i, 0)),       # streamed batch
        pl.BlockSpec((state_dim, hidden), lambda i: (0, 0)),   # VMEM resident
        pl.BlockSpec((1, hidden), lambda i: (0, 0)),
        pl.BlockSpec((hidden, hidden), lambda i: (0, 0)),
        pl.BlockSpec((1, hidden), lambda i: (0, 0)),
    ]
    compiler_params = pltpu.CompilerParams(dimension_semantics=("parallel",))

    if out_dim == 1:
        # Compact batch-major (lane-dense) output: (1, n_tiles * tm).
        w3r = jnp.transpose(w3).astype(jnp.bfloat16)   # (out_dim, hidden)
        b3c = jnp.transpose(b3).astype(jnp.float32)    # (out_dim, 1)
        out_t = pl.pallas_call(
            functools.partial(_critic_kernel, transposed_out=True),
            out_shape=jax.ShapeDtypeStruct((out_dim, n_tiles * tm), state.dtype),
            grid=grid,
            in_specs=common_in_specs + [
                pl.BlockSpec((out_dim, hidden), lambda i: (0, 0)),
                pl.BlockSpec((out_dim, 1), lambda i: (0, 0)),
            ],
            out_specs=pl.BlockSpec((out_dim, tm), lambda i: (0, i)),
            compiler_params=compiler_params,
        )(state, w1b, b1f, w2b, b2f, w3r, b3c)
        # Drop the (tiny) batch-tail padding; (1, B) -> (B, 1) is a free reshape.
        return out_t[0, :B][:, None]

    # Generic output_dim > 1 path: write (tm, out_dim) directly; OOB rows of the
    # last tile are dropped on write, so the result is exactly (B, out_dim).
    w3b = w3.astype(jnp.bfloat16)
    b3f = b3.astype(jnp.float32)
    return pl.pallas_call(
        functools.partial(_critic_kernel, transposed_out=False),
        out_shape=jax.ShapeDtypeStruct((B, out_dim), state.dtype),
        grid=grid,
        in_specs=common_in_specs + [
            pl.BlockSpec((hidden, out_dim), lambda i: (0, 0)),
            pl.BlockSpec((1, out_dim), lambda i: (0, 0)),
        ],
        out_specs=pl.BlockSpec((tm, out_dim), lambda i: (i, 0)),
        compiler_params=compiler_params,
    )(state, w1b, b1f, w2b, b2f, w3b, b3f)


def init_critic_params(key, state_dim, output_dim, hidden=64):
    """PyTorch nn.Linear default init: uniform(-1/sqrt(fan_in), 1/sqrt(fan_in))."""
    def linear(k, fan_in, fan_out):
        kw, kb = jax.random.split(k)
        bound = 1.0 / jnp.sqrt(fan_in)
        w_t = jax.random.uniform(kw, (fan_in, fan_out), jnp.float32, -bound, bound)
        b = jax.random.uniform(kb, (1, fan_out), jnp.float32, -bound, bound)
        return w_t, b

    k1, k2, k3 = jax.random.split(key, 3)
    return {
        "l1": linear(k1, state_dim, hidden),
        "l2": linear(k2, hidden, hidden),
        "l3": linear(k3, hidden, output_dim),
    }


def critic_forward_ref(state, params):
    (w1, b1), (w2, b2), (w3, b3) = params["l1"], params["l2"], params["l3"]
    h1 = jnp.tanh(state @ w1 + b1)
    h2 = jnp.tanh(h1 @ w2 + b2)
    return h2 @ w3 + b3


if __name__ == "__main__":
    key = jax.random.PRNGKey(0)
    k_p1, k_s1, k_s2, k_p3, k_s3 = jax.random.split(key, 5)

    state_dim = 32

    # Case 1: value head (output_dim=1), small batch -> single grid step,
    # compact transposed output path.
    batch, output_dim = 40, 1
    params = init_critic_params(k_p1, state_dim, output_dim)
    state = jax.random.normal(k_s1, (batch, state_dim), jnp.float32)
    out = jax.block_until_ready(critic_forward(state, params))
    ref = critic_forward_ref(state, params)
    assert out.shape == (batch, output_dim)
    assert jnp.allclose(out, ref, atol=5e-2, rtol=5e-2), "case1 mismatch"

    # Case 2: multi-tile batch grid with a partial tail tile (300 = 2*128 + 44).
    batch2 = 300
    state2 = jax.random.normal(k_s2, (batch2, state_dim), jnp.float32)
    out2 = jax.block_until_ready(critic_forward(state2, params, tm=128))
    ref2 = critic_forward_ref(state2, params)
    assert out2.shape == (batch2, output_dim)
    assert jnp.allclose(out2, ref2, atol=5e-2, rtol=5e-2), "case2 mismatch"

    # Case 3: generic output_dim > 1 path (direct (tm, out_dim) store).
    batch3, output_dim3 = 24, 5
    params3 = init_critic_params(k_p3, state_dim, output_dim3)
    state3 = jax.random.normal(k_s3, (batch3, state_dim), jnp.float32)
    out3 = jax.block_until_ready(critic_forward(state3, params3))
    ref3 = critic_forward_ref(state3, params3)
    assert out3.shape == (batch3, output_dim3)
    assert jnp.allclose(out3, ref3, atol=5e-2, rtol=5e-2), "case3 mismatch"

    print("KERNEL_OK")
</pallas_src>

<mosaic_0001>
module attributes {stable_mosaic.version = 11 : i64} {
  func.func @_critic_kernel(%arg0: i32, %arg1: memref<48x32xf32, #tpu.memory_space<vmem>>, %arg2: memref<32x64xbf16, #tpu.memory_space<vmem>>, %arg3: memref<1x64xf32, #tpu.memory_space<vmem>>, %arg4: memref<64x64xbf16, #tpu.memory_space<vmem>>, %arg5: memref<1x64xf32, #tpu.memory_space<vmem>>, %arg6: memref<1x64xbf16, #tpu.memory_space<vmem>>, %arg7: memref<1x1xf32, #tpu.memory_space<vmem>>, %arg8: memref<1x48xf32, #tpu.memory_space<vmem>>) attributes {dimension_semantics = [#tpu.dimension_semantics<parallel>], iteration_bounds = array<i64: 1>, scalar_prefetch = 0 : i64, scratch_operands = 0 : i64, tpu.core_type = #tpu.core_type<tc>, window_params = [{transform_indices = @transform_0, window_bounds = array<i64: 48, 32>}, {pipeline_mode = #tpu.pipeline_mode<synchronous>, transform_indices = @transform_1, window_bounds = array<i64: 32, 64>}, {pipeline_mode = #tpu.pipeline_mode<synchronous>, transform_indices = @transform_2, window_bounds = array<i64: 1, 64>}, {pipeline_mode = #tpu.pipeline_mode<synchronous>, transform_indices = @transform_3, window_bounds = array<i64: 64, 64>}, {pipeline_mode = #tpu.pipeline_mode<synchronous>, transform_indices = @transform_4, window_bounds = array<i64: 1, 64>}, {pipeline_mode = #tpu.pipeline_mode<synchronous>, transform_indices = @transform_5, window_bounds = array<i64: 1, 64>}, {pipeline_mode = #tpu.pipeline_mode<synchronous>, transform_indices = @transform_6, window_bounds = array<i64: 1, 1>}, {transform_indices = @transform_7, window_bounds = array<i64: 1, 48>}]} {
    %c0 = arith.constant 0 : index
    %c0_0 = arith.constant 0 : index
    %0 = vector.load %arg1[%c0, %c0_0] : memref<48x32xf32, #tpu.memory_space<vmem>>, vector<48x32xf32>
    %1 = arith.truncf %0 : vector<48x32xf32> to vector<48x32xbf16>
    %c0_1 = arith.constant 0 : index
    %c0_2 = arith.constant 0 : index
    %2 = vector.load %arg2[%c0_1, %c0_2] : memref<32x64xbf16, #tpu.memory_space<vmem>>, vector<32x64xbf16>
    %cst = arith.constant dense<0.000000e+00> : vector<48x64xf32>
    %3 = tpu.matmul %1, %2, %cst {dimension_numbers = #tpu.dot_dimension_numbers<[1], [0], [0], [1], [0, 0, 1, 1], [], []>} : vector<48x32xbf16>, vector<32x64xbf16>, vector<48x64xf32> -> vector<48x64xf32>
    %c0_3 = arith.constant 0 : index
    %c0_4 = arith.constant 0 : index
    %4 = vector.load %arg3[%c0_3, %c0_4] : memref<1x64xf32, #tpu.memory_space<vmem>>, vector<1x64xf32>
    %5 = vector.broadcast %4 : vector<1x64xf32> to vector<48x64xf32>
    %6 = arith.addf %3, %5 : vector<48x64xf32>
    %7 = math.tanh %6 : vector<48x64xf32>
    %8 = arith.truncf %7 : vector<48x64xf32> to vector<48x64xbf16>
    %c0_5 = arith.constant 0 : index
    %c0_6 = arith.constant 0 : index
    %9 = vector.load %arg4[%c0_5, %c0_6] : memref<64x64xbf16, #tpu.memory_space<vmem>>, vector<64x64xbf16>
    %cst_7 = arith.constant dense<0.000000e+00> : vector<48x64xf32>
    %10 = tpu.matmul %8, %9, %cst_7 {dimension_numbers = #tpu.dot_dimension_numbers<[1], [0], [0], [1], [0, 0, 1, 1], [], []>} : vector<48x64xbf16>, vector<64x64xbf16>, vector<48x64xf32> -> vector<48x64xf32>
    %c0_8 = arith.constant 0 : index
    %c0_9 = arith.constant 0 : index
    %11 = vector.load %arg5[%c0_8, %c0_9] : memref<1x64xf32, #tpu.memory_space<vmem>>, vector<1x64xf32>
    %12 = vector.broadcast %11 : vector<1x64xf32> to vector<48x64xf32>
    %13 = arith.addf %10, %12 : vector<48x64xf32>
    %14 = math.tanh %13 : vector<48x64xf32>
    %15 = arith.truncf %14 : vector<48x64xf32> to vector<48x64xbf16>
    %c0_10 = arith.constant 0 : index
    %c0_11 = arith.constant 0 : index
    %16 = vector.load %arg6[%c0_10, %c0_11] : memref<1x64xbf16, #tpu.memory_space<vmem>>, vector<1x64xbf16>
    %cst_12 = arith.constant dense<0.000000e+00> : vector<1x48xf32>
    %17 = tpu.matmul %16, %15, %cst_12 {dimension_numbers = #tpu.dot_dimension_numbers<[1], [1], [0], [0], [0, 0, 1, 0], [], []>} : vector<1x64xbf16>, vector<48x64xbf16>, vector<1x48xf32> -> vector<1x48xf32>
    %c0_13 = arith.constant 0 : index
    %c0_14 = arith.constant 0 : index
    %18 = vector.load %arg7[%c0_13, %c0_14] : memref<1x1xf32, #tpu.memory_space<vmem>>, vector<1x1xf32>
    %19 = vector.broadcast %18 : vector<1x1xf32> to vector<1x48xf32>
    %20 = arith.addf %17, %19 : vector<1x48xf32>
    %c0_15 = arith.constant 0 : index
    %c0_16 = arith.constant 0 : index
    %21 = vector.load %arg8[%c0_15, %c0_16] : memref<1x48xf32, #tpu.memory_space<vmem>>, vector<1x48xf32>
    tpu.vector_store %arg8[%c0_15, %c0_16], %20 {strides = array<i32>} : memref<1x48xf32, #tpu.memory_space<vmem>>, vector<1x48xf32>,
    return
  }
  func.func @transform_0(%arg0: i32) -> (i32, i32) {
    %c0_i32 = arith.constant 0 : i32
    %c0_i32_0 = arith.constant 0 : i32
    return %arg0, %c0_i32 : i32, i32
  }
  func.func @transform_1(%arg0: i32) -> (i32, i32) {
    %c0_i32 = arith.constant 0 : i32
    %c0_i32_0 = arith.constant 0 : i32
    %c0_i32_1 = arith.constant 0 : i32
    return %c0_i32, %c0_i32_0 : i32, i32
  }
  func.func @transform_2(%arg0: i32) -> (i32, i32) {
    %c0_i32 = arith.constant 0 : i32
    %c0_i32_0 = arith.constant 0 : i32
    %c0_i32_1 = arith.constant 0 : i32
    return %c0_i32, %c0_i32_0 : i32, i32
  }
  func.func @transform_3(%arg0: i32) -> (i32, i32) {
    %c0_i32 = arith.constant 0 : i32
    %c0_i32_0 = arith.constant 0 : i32
    %c0_i32_1 = arith.constant 0 : i32
    return %c0_i32, %c0_i32_0 : i32, i32
  }
  func.func @transform_4(%arg0: i32) -> (i32, i32) {
    %c0_i32 = arith.constant 0 : i32
    %c0_i32_0 = arith.constant 0 : i32
    %c0_i32_1 = arith.constant 0 : i32
    return %c0_i32, %c0_i32_0 : i32, i32
  }
  func.func @transform_5(%arg0: i32) -> (i32, i32) {
    %c0_i32 = arith.constant 0 : i32
    %c0_i32_0 = arith.constant 0 : i32
    %c0_i32_1 = arith.constant 0 : i32
    return %c0_i32, %c0_i32_0 : i32, i32
  }
  func.func @transform_6(%arg0: i32) -> (i32, i32) {
    %c0_i32 = arith.constant 0 : i32
    %c0_i32_0 = arith.constant 0 : i32
    %c0_i32_1 = arith.constant 0 : i32
    return %c0_i32, %c0_i32_0 : i32, i32
  }
  func.func @transform_7(%arg0: i32) -> (i32, i32) {
    %c0_i32 = arith.constant 0 : i32
    %c0_i32_0 = arith.constant 0 : i32
    return %c0_i32, %arg0 : i32, i32
  }
}

</mosaic_0001>

<llo_original>
// kernel: tpu_custom_call.1
$region0: #{tpu_custom_call.1}
  #allocation0 [shape = 'u32[]', space=smem, size = 0x4, offset = 0x4, fixed_abs, tag = 'smem constant byte address 0x4 - core index']
  #allocation1 [shape = 'u32[144,128]{1,0:T(1,128)}', space=vmem, size = 0x12000, scoped, tag = 'internal scratch']
  #allocation2 [shape = 'f32[1,1]{1,0:T(1,128)S(1)}', space=vmem, size = 0x200, scoped, tag = 'scoped memory for tpu_custom_call.1']
  %s0 = inlined_call_operand.vmem [shape: f32[40,32], index: 0, kind: input, shape index: {}]
  %s1 = inlined_call_operand.vmem [shape: bf16[32,64], index: 1, kind: input, shape index: {}]
  %s2 = inlined_call_operand.vmem [shape: f32[1,64], index: 2, kind: input, shape index: {}]
  %s3 = inlined_call_operand.vmem [shape: bf16[64,64], index: 3, kind: input, shape index: {}]
  %s4 = inlined_call_operand.vmem [shape: f32[1,64], index: 4, kind: input, shape index: {}]
  %s5 = inlined_call_operand.vmem [shape: bf16[1,64], index: 5, kind: input, shape index: {}]
  %s6 = inlined_call_operand.<no memory space> [shape: f32[1,1], index: 6, kind: input, shape index: {}]
  %s7 = inlined_call_operand.hbm [shape: f32[1,48], index: 7, kind: output, shape index: {}]
  %s8 = sld [smem:[#allocation0]]
  $region38: #{tpu_custom_call.1} parent=0
    _
  %s10 = ssub.s32 1, %s8
  %s11 = scalar_select 0, %s10, %s8
  %v12 = vstv %s6
  %13 = vst [vmem:[#allocation2] sm:$0x1] %v12
  $region1: #{tpu_custom_call.1} parent=0
    #allocation3 [shape = 'u8[512]{0}', space=vmem, size = 0x400, scoped, tag = 'output window, operand 0, single buffered']
    #allocation4 [shape = 's32[1]{0}', space=sflag, size = 0x4, scoped, tag = 'scoped memory for tpu_custom_call.1']
    %14 = vsyncpa [#allocation4], 0
    // Predicated region
    $region2: #{tpu_custom_call.1} parent=1 // pred_check
      _
    $region3: #{tpu_custom_call.1} parent=1 // pred_check_branch
      %16 = sbr.rel (0) target = $region5
    $region4: #{tpu_custom_call.1} parent=1 // pred_region
      _
    $region5: #{tpu_custom_call.1} parent=1 // pred_fallthru
      _
    // Predicated region
    $region6: #{tpu_custom_call.1} parent=1 // pred_check
      _
    $region7: #{tpu_custom_call.1} parent=1 // pred_check_branch
      %18 = sbr.rel (0) target = $region9
    $region8: #{tpu_custom_call.1} parent=1 // pred_region
      _
    $region9: #{tpu_custom_call.1} parent=1 // pred_fallthru
      _
    // Predicated region
    $region10: #{tpu_custom_call.1} parent=1 // pred_check
      _
    $region11: #{tpu_custom_call.1} parent=1 // pred_check_branch
      %20 = sbr.rel (0) target = $region13
    $region12: #{tpu_custom_call.1} parent=1 // pred_region
      _
    $region13: #{tpu_custom_call.1} parent=1 // pred_fallthru
      _
    // Predicated region
    $region14: #{tpu_custom_call.1} parent=1 // pred_check
      _
    $region15: #{tpu_custom_call.1} parent=1 // pred_check_branch
      %22 = sbr.rel (0) target = $region17
    $region16: #{tpu_custom_call.1} parent=1 // pred_region
      _
    $region17: #{tpu_custom_call.1} parent=1 // pred_fallthru
      _
    // Predicated region
    $region18: #{tpu_custom_call.1} parent=1 // pred_check
      _
    $region19: #{tpu_custom_call.1} parent=1 // pred_check_branch
      %24 = sbr.rel (0) target = $region21
    $region20: #{tpu_custom_call.1} parent=1 // pred_region
      _
    $region21: #{tpu_custom_call.1} parent=1 // pred_fallthru
      _
    // Predicated region
    $region22: #{tpu_custom_call.1} parent=1 // pred_check
      _
    $region23: #{tpu_custom_call.1} parent=1 // pred_check_branch
      %26 = sbr.rel (0) target = $region25
    $region24: #{tpu_custom_call.1} parent=1 // pred_region
      _
    $region25: #{tpu_custom_call.1} parent=1 // pred_fallthru
      _
    // Predicated region
    $region26: #{tpu_custom_call.1} parent=1 // pred_check
      _
    $region27: #{tpu_custom_call.1} parent=1 // pred_check_branch
      %28 = sbr.rel (0) target = $region29
    $region28: #{tpu_custom_call.1} parent=1 // pred_region
      _
    $region29: #{tpu_custom_call.1} parent=1 // pred_fallthru
      _
    %v30 = vld [vmem:[%s0] sm:$0xff]
    %v31 = vld [vmem:[%s0 + $0x8] sm:$0xff]
    %v32 = vld [vmem:[%s0 + $0x10] sm:$0xff]
    %v33 = vld [vmem:[%s0 + $0x18] sm:$0xff]
    %v34 = vld [vmem:[%s0 + $0x20] sm:$0xff]
    %v35 = vld [vmem:[%s0 + $0x28] sm:$0xff]
    %v36 = vpack.c.bf16 %v31, %v30
    %v37 = vpack.c.bf16 %v33, %v32
    %v38 = vpack.c.bf16 %v35, %v34
    %v39 = vld [vmem:[%s1] sm:$0xf]
    %v40 = vld [vmem:[%s1 + $0x4] sm:$0xf]
    %v41 = vld [vmem:[%s1 + $0x8] sm:$0xf]
    %v42 = vld [vmem:[%s1 + $0xc] sm:$0xf]
    %v43 = vld [vmem:[%s2] sm:$0x1]
    %v45 = vlaneseq
    %v46 = vshrl.u32 %v45, 7
    %v47 = vsub.s32 0, %v46
    %v48 = vrot.slane %v43, %v47
    %v54 = vunpack.c.l.b16 %v39
    %v55 = vunpack.c.l.b16 %v40
    %v56 = vunpack.c.l.b16 %v41
    %v57 = vunpack.c.l.b16 %v42
    %v58 = vpack.c.b16 %v55, %v54
    %v59 = vpack.c.b16 %v57, %v56
    %vm62 = vcmask 261120
    %v64 = vsel %vm62, %v36, 0
    %v67 = vsel %vm62, %v37, 0
    %v70 = vsel %vm62, %v38, 0
    %72 = vmatprep.subr.bf16.mxu0 0
    %73 = vmatpush1.bf16.msra.mxu0 %v58
    %74 = vmatprep.subr.bf16.mxu0 0
    %75 = vmatpush1.bf16.msra.mxu0 %v59
    %76 = vmatprep.subr.bf16.mxu0 0
    %77 = vmatpush1.bf16.msra.mxu0 0
    %78 = vmatprep.subr.bf16.mxu0 0
    %79 = vmatpush1.bf16.msra.mxu0 0
    %80 = vmatprep.subr.bf16.mxu0 0
    %81 = vmatpush1.bf16.msra.mxu0 0
    %82 = vmatprep.subr.bf16.mxu0 0
    %83 = vmatpush1.bf16.msra.mxu0 0
    %84 = vmatprep.subr.bf16.mxu0 0
    %85 = vmatpush1.bf16.msra.mxu0 0
    %86 = vmatprep.subr.bf16.mxu0 0
    %87 = vmatpush1.bf16.msra.mxu0 0
    %88 = vmatprep.subr.bf16.mxu0 0
    %89 = vmatpush1.bf16.msra.mxu0 0
    %90 = vmatprep.subr.bf16.mxu0 0
    %91 = vmatpush1.bf16.msra.mxu0 0
    %92 = vmatprep.subr.bf16.mxu0 0
    %93 = vmatpush1.bf16.msra.mxu0 0
    %94 = vmatprep.subr.bf16.mxu0 0
    %95 = vmatpush1.bf16.msra.mxu0 0
    %96 = vmatprep.subr.bf16.mxu0 0
    %97 = vmatpush1.bf16.msra.mxu0 0
    %98 = vmatprep.subr.bf16.mxu0 0
    %99 = vmatpush1.bf16.msra.mxu0 0
    %100 = vmatprep.subr.bf16.mxu0 0
    %101 = vmatpush1.bf16.msra.mxu0 0
    %102 = vmatprep.subr.bf16.mxu0 0
    %103 = vmatpush1.bf16.msra.mxu0 0
    %104 = vmatprep.mubr.bf16.mxu0 0
    %105 = vmatmul.mubr.bf16.gmra.mrb[0].mxu0 %v64
    %v106 = vpop.f32.mrb[0].mxu0
    %v107 = vadd.f32 %v48, %v106
    %v108 = vpop.f32.mrb[0].mxu0
    %v109 = vpop.f32.mrb[0].mxu0
    %v110 = vadd.f32 %v48, %v109
    %v111 = vpop.f32.mrb[0].mxu0
    %112 = vmatprep.mubr.bf16.mxu0 0
    %113 = vmatmul.mubr.bf16.gmra.mrb[0].mxu0 %v67
    %v114 = vpop.f32.mrb[0].mxu0
    %v115 = vadd.f32 %v48, %v114
    %v116 = vpop.f32.mrb[0].mxu0
    %v117 = vpop.f32.mrb[0].mxu0
    %v118 = vadd.f32 %v48, %v117
    %v119 = vpop.f32.mrb[0].mxu0
    %120 = vmatprep.mubr.bf16.mxu0 0
    %121 = vmatmul.mubr.bf16.gmra.mrb[0].mxu0 %v70
    %v122 = vpop.f32.mrb[0].mxu0
    %v123 = vadd.f32 %v48, %v122
    %v124 = vpop.f32.mrb[0].mxu0
    %v125 = vpop.f32.mrb[0].mxu0
    %v126 = vadd.f32 %v48, %v125
    %v127 = vpop.f32.mrb[0].mxu0
    %128 = vdwg.mxu0
    %v129 = vtanh.pop %v107
    %v130 = vtanh.pop %v110
    %v131 = vtanh.pop %v115
    %v132 = vtanh.pop %v118
    %v133 = vtanh.pop %v123
    %v134 = vtanh.pop %v126
    %v135 = vpack.c.bf16 %v130, %v129
    %v136 = vpack.c.bf16 %v132, %v131
    %v137 = vpack.c.bf16 %v134, %v133
    %v138 = vld [vmem:[%s3] sm:$0xf]
    %v139 = vld [vmem:[%s3 + $0x4] sm:$0xf]
    %v140 = vld [vmem:[%s3 + $0x8] sm:$0xf]
    %v141 = vld [vmem:[%s3 + $0xc] sm:$0xf]
    %v142 = vld [vmem:[%s3 + $0x10] sm:$0xf]
    %v143 = vld [vmem:[%s3 + $0x14] sm:$0xf]
    %v144 = vld [vmem:[%s3 + $0x18] sm:$0xf]
    %v145 = vld [vmem:[%s3 + $0x1c] sm:$0xf]
    %v146 = vld [vmem:[%s4] sm:$0x1]
    %v148 = vlaneseq
    %v149 = vshrl.u32 %v148, 7
    %v150 = vsub.s32 0, %v149
    %v151 = vrot.slane %v146, %v150
    %v161 = vunpack.c.l.b16 %v138
    %v162 = vunpack.c.l.b16 %v139
    %v163 = vunpack.c.l.b16 %v140
    %v164 = vunpack.c.l.b16 %v141
    %v165 = vunpack.c.l.b16 %v142
    %v166 = vunpack.c.l.b16 %v143
    %v167 = vunpack.c.l.b16 %v144
    %v168 = vunpack.c.l.b16 %v145
    %v169 = vpack.c.b16 %v162, %v161
    %v170 = vpack.c.b16 %v164, %v163
    %v171 = vpack.c.b16 %v166, %v165
    %v172 = vpack.c.b16 %v168, %v167
    %vm177 = vcmask 523264
    %v179 = vsel %vm177, %v135, 0
    %v182 = vsel %vm177, %v136, 0
    %v185 = vsel %vm177, %v137, 0
    %187 = vmatprep.subr.bf16.mxu0 0
    %188 = vmatpush1.bf16.msra.mxu0 %v169
    %189 = vmatprep.subr.bf16.mxu0 0
    %190 = vmatpush1.bf16.msra.mxu0 %v170
    %191 = vmatprep.subr.bf16.mxu0 0
    %192 = vmatpush1.bf16.msra.mxu0 %v171
    %193 = vmatprep.subr.bf16.mxu0 0
    %194 = vmatpush1.bf16.msra.mxu0 %v172
    %195 = vmatprep.subr.bf16.mxu0 0
    %196 = vmatpush1.bf16.msra.mxu0 0
    %197 = vmatprep.subr.bf16.mxu0 0
    %198 = vmatpush1.bf16.msra.mxu0 0
    %199 = vmatprep.subr.bf16.mxu0 0
    %200 = vmatpush1.bf16.msra.mxu0 0
    %201 = vmatprep.subr.bf16.mxu0 0
    %202 = vmatpush1.bf16.msra.mxu0 0
    %203 = vmatprep.subr.bf16.mxu0 0
    %204 = vmatpush1.bf16.msra.mxu0 0
    %205 = vmatprep.subr.bf16.mxu0 0
    %206 = vmatpush1.bf16.msra.mxu0 0
    %207 = vmatprep.subr.bf16.mxu0 0
    %208 = vmatpush1.bf16.msra.mxu0 0
    %209 = vmatprep.subr.bf16.mxu0 0
    %210 = vmatpush1.bf16.msra.mxu0 0
    %211 = vmatprep.subr.bf16.mxu0 0
    %212 = vmatpush1.bf16.msra.mxu0 0
    %213 = vmatprep.subr.bf16.mxu0 0
    %214 = vmatpush1.bf16.msra.mxu0 0
    %215 = vmatprep.subr.bf16.mxu0 0
    %216 = vmatpush1.bf16.msra.mxu0 0
    %217 = vmatprep.subr.bf16.mxu0 0
    %218 = vmatpush1.bf16.msra.mxu0 0
    %219 = vmatprep.mubr.bf16.mxu0 0
    %220 = vmatmul.mubr.bf16.gmra.mrb[0].mxu0 %v179
    %v221 = vpop.f32.mrb[0].mxu0
    %v222 = vadd.f32 %v151, %v221
    %v223 = vpop.f32.mrb[0].mxu0
    %v224 = vpop.f32.mrb[0].mxu0
    %v225 = vadd.f32 %v151, %v224
    %v226 = vpop.f32.mrb[0].mxu0
    %227 = vmatprep.mubr.bf16.mxu0 0
    %228 = vmatmul.mubr.bf16.gmra.mrb[0].mxu0 %v182
    %v229 = vpop.f32.mrb[0].mxu0
    %v230 = vadd.f32 %v151, %v229
    %v231 = vpop.f32.mrb[0].mxu0
    %v232 = vpop.f32.mrb[0].mxu0
    %v233 = vadd.f32 %v151, %v232
    %v234 = vpop.f32.mrb[0].mxu0
    %235 = vmatprep.mubr.bf16.mxu0 0
    %236 = vmatmul.mubr.bf16.gmra.mrb[0].mxu0 %v185
    %v237 = vpop.f32.mrb[0].mxu0
    %v238 = vadd.f32 %v151, %v237
    %v239 = vpop.f32.mrb[0].mxu0
    %v240 = vpop.f32.mrb[0].mxu0
    %v241 = vadd.f32 %v151, %v240
    %v242 = vpop.f32.mrb[0].mxu0
    %243 = vdwg.mxu0
    %v244 = vtanh.pop %v222
    %v245 = vtanh.pop %v225
    %v246 = vtanh.pop %v230
    %v247 = vtanh.pop %v233
    %v248 = vtanh.pop %v238
    %v249 = vtanh.pop %v241
    %v250 = vpack.c.bf16 %v245, %v244
    %v251 = vpack.c.bf16 %v247, %v246
    %v252 = vpack.c.bf16 %v249, %v248
    %v253 = vld [vmem:[%s5] sm:$0x1]
    %v254 = vld [vmem:[#allocation2] sm:$0x1]
    %256 = vset.pattern.permute.xlu0 0
    %257 = vperm.xlu0 %256, %v254
    %v258 = vpop.permute.xlu0 %257
    %v260 = vlaneseq
    %v261 = vshrl.u32 %v260, 7
    %v262 = vsub.s32 0, %v261
    %v263 = vrot.slane %v258, %v262
    %v265 = vsel %vm177, %v253, 0
    %v268 = vsel %vm177, %v250, 0
    %v271 = vsel %vm177, %v251, 0
    %v274 = vsel %vm177, %v252, 0
    %276 = vmatprep.subr.bf16.mxu0 0
    %277 = vmatpush1.bf16.xpose.msra.mxu0 %v268
    %278 = vmatprep.subr.bf16.mxu0 0
    %279 = vmatpush1.bf16.xpose.msra.mxu0 %v271
    %280 = vmatprep.subr.bf16.mxu0 0
    %281 = vmatpush1.bf16.xpose.msra.mxu0 %v274
    %282 = vmatprep.subr.bf16.mxu0 0
    %283 = vmatpush1.bf16.xpose.msra.mxu0 0
    %284 = vmatprep.subr.bf16.mxu0 0
    %285 = vmatpush1.bf16.xpose.msra.mxu0 0
    %286 = vmatprep.subr.bf16.mxu0 0
    %287 = vmatpush1.bf16.xpose.msra.mxu0 0
    %288 = vmatprep.subr.bf16.mxu0 0
    %289 = vmatpush1.bf16.xpose.msra.mxu0 0
    %290 = vmatprep.subr.bf16.mxu0 0
    %291 = vmatpush1.bf16.xpose.msra.mxu0 0
    %292 = vmatprep.subr.bf16.mxu0 0
    %293 = vmatpush1.bf16.xpose.msra.mxu0 0
    %294 = vmatprep.subr.bf16.mxu0 0
    %295 = vmatpush1.bf16.xpose.msra.mxu0 0
    %296 = vmatprep.subr.bf16.mxu0 0
    %297 = vmatpush1.bf16.xpose.msra.mxu0 0
    %298 = vmatprep.subr.bf16.mxu0 0
    %299 = vmatpush1.bf16.xpose.msra.mxu0 0
    %300 = vmatprep.subr.bf16.mxu0 0
    %301 = vmatpush1.bf16.xpose.msra.mxu0 0
    %302 = vmatprep.subr.bf16.mxu0 0
    %303 = vmatpush1.bf16.xpose.msra.mxu0 0
    %304 = vmatprep.subr.bf16.mxu0 0
    %305 = vmatpush1.bf16.xpose.msra.mxu0 0
    %306 = vmatprep.subr.bf16.mxu0 0
    %307 = vmatpush1.bf16.xpose.msra.mxu0 0
    %308 = vmatprep.mubr.bf16.mxu0 0
    %309 = vmatmul.mubr.bf16.gmra.mrb[0].mxu0 %v265
    %v310 = vpop.f32.mrb[0].mxu0
    %v311 = vadd.f32 %v263, %v310
    %v312 = vpop.f32.mrb[0].mxu0
    %v313 = vpop.f32.mrb[0].mxu0
    %v314 = vpop.f32.mrb[0].mxu0
    %315 = vdwg.mxu0
    %vm316 = vcmask 385024
    %317 = vst.msk [vmem:[#allocation3] sm:$0x1] %vm316, %v311
    // Predicated region
    $region30: #{tpu_custom_call.1} parent=1 // pred_check
      _
    $region31: #{tpu_custom_call.1} parent=1 // pred_check_branch
      %319 = sbr.rel (0) target = $region33
    $region32: #{tpu_custom_call.1} parent=1 // pred_region
      %s321 = ssub.s32 16, 16
      %322 = vsyncadd [#allocation4], %s321
      %s324 = sshll.u32 [#allocation3], 4
      %s325 = int_to_ptr.vmem [resolvable:$true] %s324
      %327 = dma.vmem_to_hbm [thread:$0]  %s325, 16, %s7, [#allocation4]
    $region33: #{tpu_custom_call.1} parent=1 // pred_fallthru
      _
    // Predicated region
    $region34: #{tpu_custom_call.1} parent=1 // pred_check
      _
    $region35: #{tpu_custom_call.1} parent=1 // pred_check_branch
      %329 = sbr.rel (0) target = $region37
    $region36: #{tpu_custom_call.1} parent=1 // pred_region
      %330 = dma.done [#allocation4], 16
    $region37: #{tpu_custom_call.1} parent=1 // pred_fallthru
      _
    %331 = vsyncpa [#allocation4], 1

</llo_original>
